<compile_context>
chip_gen: v5e
topology: v5e:2x2
jax: 0.10.0
libtpu: 0.0.40
codegen_flags: <defaults>
</compile_context>

<pallas_src>
import numpy as np
import jax
import jax.numpy as jnp
from jax.experimental import pallas as pl
from jax.experimental.pallas import tpu as pltpu


TB = 256  # batch tile (lane / MXU-N width); full 256-wide MXU pass on v6e/v7x


# ----------------------------- Pallas kernel -------------------------------
def svdpp_kernel(mh_ref, impl_ref, emb_ref, bias_ref, out_ref):
    d = impl_ref.shape[0]  # embedding dim (static)

    # Single fused MXU matmul (bf16 operands, f32 accumulation):
    #   y[D, TB] = impl_stacked[D, 2P] @ scaled_multihot[2P, TB]
    y = jnp.dot(impl_ref[...], mh_ref[...],
                preferred_element_type=jnp.float32)              # [D, TB] f32

    # Stacked bf16 embeddings: rows [0, D) = scientist, rows [D, 2D) = paper.
    sc = emb_ref[pl.ds(0, d), :].astype(jnp.float32)             # [D, TB] f32
    p  = emb_ref[pl.ds(d, d), :].astype(jnp.float32)             # [D, TB] f32

    # interaction = sum_d (p_u + y_u + y_u_wl)[d, b] * q_i[d, b]
    inter = jnp.sum((sc + y) * p, axis=0, keepdims=True)         # [1, TB]

    # bias = b_u + b_i + mu, pre-summed on the host (lane-dense f32 row)
    out_ref[...] = inter + bias_ref[...]


def svdpp_forward(mh_T, impl_T, emb_T, bias, *, tb=TB):
    """All operands are pre-laid-out lane-dense (batch on the last axis)."""
    d2, b_pad = emb_T.shape
    d = d2 // 2
    k2 = mh_T.shape[0]                       # 2 * num_papers
    assert b_pad % tb == 0
    grid = (b_pad // tb,)

    out = pl.pallas_call(
        svdpp_kernel,
        out_shape=jax.ShapeDtypeStruct((1, b_pad), jnp.float32),
        grid=grid,
        in_specs=[
            # scaled multi-hot membership, transposed [2P, B_pad] (bf16)
            pl.BlockSpec((k2, tb), lambda i: (0, i)),
            # stacked implicit tables, transposed [D, 2P] (bf16), resident
            pl.BlockSpec((d, k2), lambda i: (0, 0)),
            # stacked gathered scientist+paper embeddings [2D, B_pad] (bf16)
            pl.BlockSpec((d2, tb), lambda i: (0, i)),
            # pre-summed biases + global mean [1, B_pad] (f32)
            pl.BlockSpec((1, tb), lambda i: (0, i)),
        ],
        out_specs=pl.BlockSpec((1, tb), lambda i: (0, i)),
        compiler_params=pltpu.CompilerParams(
            # batch tiles are independent -> shard across TCs (v7x megacore)
            dimension_semantics=("parallel",),
        ),
    )(mh_T, impl_T, emb_T, bias)
    return out[0]                            # [B_pad]


# ------------------------------- references --------------------------------
def reference_kernel_math(mh_T, impl_T, emb_T, bias):
    """Plain-JAX mirror of the kernel math (same bf16 operands, f32 accum)."""
    d = impl_T.shape[0]
    y = jnp.dot(impl_T, mh_T, preferred_element_type=jnp.float32)
    sc = emb_T[:d, :].astype(jnp.float32)
    p = emb_T[d:, :].astype(jnp.float32)
    inter = jnp.sum((sc + y) * p, axis=0, keepdims=True)
    return (inter + bias)[0]


def reference_module(sc_ids, p_ids, scientist_factors, paper_factors,
                     scientist_bias, paper_bias, implicit_factors,
                     implicit_wishlist, s2p, s2w, global_mean, emb_dim):
    """Loop-based f32 reference with the exact PyTorch-module semantics."""
    sf = np.asarray(scientist_factors)
    pf = np.asarray(paper_factors)
    imf = np.asarray(implicit_factors)
    imw = np.asarray(implicit_wishlist)
    sb = np.asarray(scientist_bias)[:, 0]
    pb = np.asarray(paper_bias)[:, 0]
    preds = []
    for s, p in zip(np.asarray(sc_ids), np.asarray(p_ids)):
        s, p = int(s), int(p)
        lst = s2p.get(s, [])
        y_u = (imf[np.asarray(lst)].sum(0) / np.sqrt(float(len(lst)))
               if len(lst) > 0 else np.zeros(emb_dim, np.float32))
        lst = s2w.get(s, [])
        y_w = (imw[np.asarray(lst)].sum(0) / np.sqrt(float(len(lst)))
               if len(lst) > 0 else np.zeros(emb_dim, np.float32))
        inter = float(np.dot(sf[s] + y_u + y_w, pf[p]))
        preds.append(inter + sb[s] + pb[p] + global_mean)
    return np.asarray(preds, np.float32)


# ------------------------------- glue / setup ------------------------------
if __name__ == "__main__":
    NUM_SCIENTISTS = 64
    NUM_PAPERS = 128          # P;  fused K = 2P = 256 (one full MXU pass)
    EMB_DIM = 64              # sublane extent; no padding needed
    BATCH = 300
    GLOBAL_MEAN = 3.82

    key = jax.random.PRNGKey(0)
    k_sf, k_pf, k_if, k_iw, k_sid, k_pid = jax.random.split(key, 6)

    # Parameters (nn.init.normal_(std=0.1) for factors, zeros for biases).
    scientist_factors = 0.1 * jax.random.normal(k_sf, (NUM_SCIENTISTS, EMB_DIM), jnp.float32)
    paper_factors     = 0.1 * jax.random.normal(k_pf, (NUM_PAPERS, EMB_DIM), jnp.float32)
    implicit_factors  = 0.1 * jax.random.normal(k_if, (NUM_PAPERS, EMB_DIM), jnp.float32)
    implicit_wishlist = 0.1 * jax.random.normal(k_iw, (NUM_PAPERS, EMB_DIM), jnp.float32)
    scientist_bias    = jnp.zeros((NUM_SCIENTISTS, 1), jnp.float32)
    paper_bias        = jnp.zeros((NUM_PAPERS, 1), jnp.float32)

    # Deterministic implicit-feedback dicts (variable lengths, some empty).
    s2p = {s: [(s * 3 + j) % NUM_PAPERS for j in range(s % 5)]
           for s in range(NUM_SCIENTISTS)}
    s2w = {s: [(s * 7 + 2 * j + 1) % NUM_PAPERS for j in range(s % 3)]
           for s in range(NUM_SCIENTISTS)}
    s2p[3] = [7, 7, 21]       # duplicate paper id: exercises duplicate counting

    scientist_ids = jax.random.randint(k_sid, (BATCH,), 0, NUM_SCIENTISTS)
    paper_ids     = jax.random.randint(k_pid, (BATCH,), 0, NUM_PAPERS)
    sc_ids_np = np.asarray(scientist_ids)
    p_ids_np  = np.asarray(paper_ids)

    B_pad = ((BATCH + TB - 1) // TB) * TB

    # ---- layout plumbing: batch on lanes, emb dim on sublanes (no padding) --
    # Stacked gathered embeddings [2D, B_pad]: rows [0,D)=scientist, [D,2D)=paper.
    emb = np.zeros((2 * EMB_DIM, B_pad), np.float32)
    emb[:EMB_DIM, :BATCH] = np.asarray(scientist_factors)[sc_ids_np].T
    emb[EMB_DIM:, :BATCH] = np.asarray(paper_factors)[p_ids_np].T
    emb_T = jnp.asarray(emb, jnp.bfloat16)            # [2D, B_pad] bf16

    # Fused, pre-scaled multi-hot membership matrix, transposed: [2P, B_pad].
    # Values = multiplicity * 1/sqrt(|list|)  (np.add.at counts duplicates,
    # matching the PyTorch sum over the raw list).
    # NOTE: bf16 quantization of the scale / implicit tables injects <~1% rel
    # error vs. f32 PyTorch; covered by the atol=2e-2 module check below.
    mh = np.zeros((2 * NUM_PAPERS, B_pad), np.float32)

    def fill(mapping, row_offset):
        for b, s in enumerate(sc_ids_np):
            lst = mapping.get(int(s), [])
            if len(lst) > 0:
                inv = 1.0 / np.sqrt(float(len(lst)))
                np.add.at(mh, (row_offset + np.asarray(lst, np.int64), b), inv)

    fill(s2p, 0)
    fill(s2w, NUM_PAPERS)
    mh_T = jnp.asarray(mh, jnp.bfloat16)               # [2P, B_pad] bf16

    # Stacked implicit factor tables, transposed: [D, 2P] bf16 (resident block).
    impl = np.zeros((EMB_DIM, 2 * NUM_PAPERS), np.float32)
    impl[:, :NUM_PAPERS] = np.asarray(implicit_factors).T
    impl[:, NUM_PAPERS:] = np.asarray(implicit_wishlist).T
    impl_T = jnp.asarray(impl, jnp.bfloat16)

    # Pre-summed lane-dense bias row [1, B_pad]: b_u + b_i + mu.
    bias = np.zeros((1, B_pad), np.float32)
    bias[0, :BATCH] = (np.asarray(scientist_bias)[sc_ids_np, 0]
                       + np.asarray(paper_bias)[p_ids_np, 0]
                       + GLOBAL_MEAN)
    bias = jnp.asarray(bias)

    # ------------------------------ run kernel -----------------------------
    pred_full = svdpp_forward(mh_T, impl_T, emb_T, bias, tb=TB)
    pred_full = jax.block_until_ready(pred_full)
    pred = np.asarray(pred_full)[:BATCH]

    # Check 1: same math in plain JAX (bf16 MXU dot, f32 elementwise).
    ref_k = np.asarray(reference_kernel_math(mh_T, impl_T, emb_T, bias))
    np.testing.assert_allclose(np.asarray(pred_full), ref_k, rtol=1e-5, atol=1e-4)

    # Check 2: PyTorch-module semantics in f32 (slack for bf16 quantization
    # of the mask / implicit tables / embeddings).
    ref_m = reference_module(sc_ids_np, p_ids_np, scientist_factors, paper_factors,
                             scientist_bias, paper_bias, implicit_factors,
                             implicit_wishlist, s2p, s2w, GLOBAL_MEAN, EMB_DIM)
    np.testing.assert_allclose(pred, ref_m, rtol=0, atol=2e-2)

    print("KERNEL_OK")
</pallas_src>

<mosaic_0001>
module attributes {stable_mosaic.version = 11 : i64} {
  func.func @svdpp_kernel(%arg0: i32, %arg1: memref<256x256xbf16, #tpu.memory_space<vmem>>, %arg2: memref<64x256xbf16, #tpu.memory_space<vmem>>, %arg3: memref<128x256xbf16, #tpu.memory_space<vmem>>, %arg4: memref<1x256xf32, #tpu.memory_space<vmem>>, %arg5: memref<1x256xf32, #tpu.memory_space<vmem>>) attributes {dimension_semantics = [#tpu.dimension_semantics<parallel>], iteration_bounds = array<i64: 2>, scalar_prefetch = 0 : i64, scratch_operands = 0 : i64, tpu.core_type = #tpu.core_type<tc>, window_params = [{transform_indices = @transform_0, window_bounds = array<i64: 256, 256>}, {pipeline_mode = #tpu.pipeline_mode<synchronous>, transform_indices = @transform_1, window_bounds = array<i64: 64, 256>}, {transform_indices = @transform_2, window_bounds = array<i64: 128, 256>}, {transform_indices = @transform_3, window_bounds = array<i64: 1, 256>}, {transform_indices = @transform_4, window_bounds = array<i64: 1, 256>}]} {
    %c0 = arith.constant 0 : index
    %c0_0 = arith.constant 0 : index
    %0 = vector.load %arg2[%c0, %c0_0] : memref<64x256xbf16, #tpu.memory_space<vmem>>, vector<64x256xbf16>
    %c0_1 = arith.constant 0 : index
    %c0_2 = arith.constant 0 : index
    %1 = vector.load %arg1[%c0_1, %c0_2] : memref<256x256xbf16, #tpu.memory_space<vmem>>, vector<256x256xbf16>
    %cst = arith.constant dense<0.000000e+00> : vector<64x256xf32>
    %2 = tpu.matmul %0, %1, %cst {dimension_numbers = #tpu.dot_dimension_numbers<[1], [0], [0], [1], [0, 0, 1, 1], [], []>} : vector<64x256xbf16>, vector<256x256xbf16>, vector<64x256xf32> -> vector<64x256xf32>
    %c0_3 = arith.constant 0 : index
    %c0_4 = arith.constant 0 : index
    %3 = vector.load %arg3[%c0_3, %c0_4] : memref<128x256xbf16, #tpu.memory_space<vmem>>, vector<64x256xbf16>
    %4 = arith.extf %3 : vector<64x256xbf16> to vector<64x256xf32>
    %c64 = arith.constant 64 : index
    %c0_5 = arith.constant 0 : index
    %5 = vector.load %arg3[%c64, %c0_5] : memref<128x256xbf16, #tpu.memory_space<vmem>>, vector<64x256xbf16>
    %6 = arith.extf %5 : vector<64x256xbf16> to vector<64x256xf32>
    %7 = arith.addf %4, %2 : vector<64x256xf32>
    %8 = arith.mulf %7, %6 : vector<64x256xf32>
    %cst_6 = arith.constant dense<0.000000e+00> : vector<256xf32>
    %9 = vector.multi_reduction <add>, %8, %cst_6 [0] : vector<64x256xf32> to vector<256xf32>
    %10 = vector.shape_cast %9 : vector<256xf32> to vector<1x256xf32>
    %c0_7 = arith.constant 0 : index
    %c0_8 = arith.constant 0 : index
    %11 = vector.load %arg4[%c0_7, %c0_8] : memref<1x256xf32, #tpu.memory_space<vmem>>, vector<1x256xf32>
    %12 = arith.addf %10, %11 : vector<1x256xf32>
    %c0_9 = arith.constant 0 : index
    %c0_10 = arith.constant 0 : index
    %13 = vector.load %arg5[%c0_9, %c0_10] : memref<1x256xf32, #tpu.memory_space<vmem>>, vector<1x256xf32>
    tpu.vector_store %arg5[%c0_9, %c0_10], %12 {strides = array<i32>} : memref<1x256xf32, #tpu.memory_space<vmem>>, vector<1x256xf32>,
    return
  }
  func.func @transform_0(%arg0: i32) -> (i32, i32) {
    %c0_i32 = arith.constant 0 : i32
    %c0_i32_0 = arith.constant 0 : i32
    return %c0_i32, %arg0 : i32, i32
  }
  func.func @transform_1(%arg0: i32) -> (i32, i32) {
    %c0_i32 = arith.constant 0 : i32
    %c0_i32_0 = arith.constant 0 : i32
    %c0_i32_1 = arith.constant 0 : i32
    return %c0_i32, %c0_i32_0 : i32, i32
  }
  func.func @transform_2(%arg0: i32) -> (i32, i32) {
    %c0_i32 = arith.constant 0 : i32
    %c0_i32_0 = arith.constant 0 : i32
    return %c0_i32, %arg0 : i32, i32
  }
  func.func @transform_3(%arg0: i32) -> (i32, i32) {
    %c0_i32 = arith.constant 0 : i32
    %c0_i32_0 = arith.constant 0 : i32
    return %c0_i32, %arg0 : i32, i32
  }
  func.func @transform_4(%arg0: i32) -> (i32, i32) {
    %c0_i32 = arith.constant 0 : i32
    %c0_i32_0 = arith.constant 0 : i32
    return %c0_i32, %arg0 : i32, i32
  }
}

</mosaic_0001>

<llo_original>
// kernel: tpu_custom_call.1
$region0: #{tpu_custom_call.1}
  #allocation0 [shape = 'u32[]', space=smem, size = 0x4, offset = 0x4, fixed_abs, tag = 'smem constant byte address 0x4 - core index']
  #allocation1 [shape = 'u32[72,128]{1,0:T(1,128)}', space=vmem, size = 0x9000, scoped, tag = 'internal scratch']
  %s0 = inlined_call_operand.hbm [shape: bf16[256,512], index: 0, kind: input, shape index: {}]
  %s1 = inlined_call_operand.hbm [shape: bf16[64,256], index: 1, kind: input, shape index: {}]
  %s2 = inlined_call_operand.hbm [shape: bf16[128,512], index: 2, kind: input, shape index: {}]
  %s3 = inlined_call_operand.hbm [shape: f32[1,512], index: 3, kind: input, shape index: {}]
  %s4 = inlined_call_operand.hbm [shape: f32[1,512], index: 4, kind: output, shape index: {}]
  %s5 = sld [smem:[#allocation0]]
  $region65: #{tpu_custom_call.1} parent=0
    _
  %s7 = ssub.s32 1, %s5
  %s8 = scalar_select 0, %s7, %s5
  $region1: #{tpu_custom_call.1} parent=0
    #allocation2 [shape = 'u8[262144]{0}', space=vmem, size = 0x40000, scoped, tag = 'input window, operand 0']
    #allocation3 [shape = 's32[2]{0}', space=sflag, size = 0x8, scoped, tag = 'scoped memory for tpu_custom_call.1']
    #allocation4 [shape = 's32[2]{0}', space=sflag, size = 0x8, scoped, tag = 'scoped memory for tpu_custom_call.1']
    #allocation5 [shape = 'u8[32768]{0}', space=vmem, size = 0x8000, scoped, tag = 'input window, operand 1, single buffered']
    #allocation6 [shape = 's32[1]{0}', space=sflag, size = 0x4, scoped, tag = 'scoped memory for tpu_custom_call.1']
    #allocation7 [shape = 'u8[131072]{0}', space=vmem, size = 0x20000, scoped, tag = 'input window, operand 2']
    #allocation8 [shape = 'u8[2048]{0}', space=vmem, size = 0x800, scoped, tag = 'input window, operand 3']
    #allocation9 [shape = 'u8[2048]{0}', space=vmem, size = 0x800, scoped, tag = 'output window, operand 0']
    %9 = vsyncpa [#allocation3], 0
    %s10 = scalar_lea.sflag [#allocation3], 1
    %11 = vsyncpa %s10, 0
    %12 = vsyncpa [#allocation6], 0
    %13 = vsyncpa [#allocation4], 0
    %s14 = scalar_lea.sflag [#allocation4], 1
    %15 = vsyncpa %s14, 0
    loop: start=0, step=1, limit=4
    $region2: #{tpu_custom_call.1} parent=1 // loop_pre_header
      _
    $region3: #{tpu_custom_call.1} parent=1 // loop_header
      %s17 = sphi 0, %s21
      %p18 = scmp.ge.s32.totalorder %s17, 4
      %s27 = sphi 0, %s29
      %s30 = sphi 0, %s27
      %s31 = sphi 0, %s30
      %s47 = sphi 0, %s31
      %s51 = sphi 0, %s51
      %s53 = sphi 0, %s51
      %s54 = sphi 0, %s53
      %s68 = sphi 0, %s54
      %s74 = sphi 0, %s76
      %s77 = sphi 0, %s74
      %s78 = sphi 0, %s77
      %s94 = sphi 0, %s78
      %s100 = sphi 0, %s102
      %s103 = sphi 0, %s100
      %s104 = sphi 0, %s103
      %s120 = sphi 0, %s104
      %s126 = sphi 0, %s128
      %s129 = sphi 0, %s126
      %s130 = sphi 0, %s129
      %s146 = sphi 0, %s130
    $region4: #{tpu_custom_call.1} parent=1 // loop_header_branch
      %20 = sbr.rel (%p18) target = $region8
    $region5: #{tpu_custom_call.1} parent=1 // loop_body
      %s22 = ssub.s32 %s17, 1
      %s23 = ssub.s32 %s17, 2
      %s24 = sadd.s32 %s17, 1
      %s25 = ssub.s32 %s17, %s24
      %p26 = scmp.eq.s32.totalorder %s25, 0
      %s28 = sadd.s32 %s27, 1
      %s29 = scalar_select %p26, %s27, %s28
      %p32 = pneg %p26
      %p33 = scmp.eq.s32.totalorder %s17, 1
      %p34 = por %p32, %p33
      %p35 = scmp.ne.s32.totalorder %s27, %s30
      %p36 = scmp.eq.s32.totalorder %s17, 0
      %p37 = por %p35, %p36
      %p38 = scmp.ne.s32.totalorder %s27, %s30
      %p39 = scmp.eq.s32.totalorder %s22, 1
      %p40 = por %p38, %p39
      %p41 = scmp.ne.s32.totalorder %s30, %s31
      %p42 = scmp.eq.s32.totalorder %s22, 0
      %p43 = por %p41, %p42
      %p44 = scmp.ne.s32.totalorder %s30, %s31
      %p45 = scmp.eq.s32.totalorder %s23, 1
      %p46 = por %p44, %p45
      %p48 = scmp.ne.s32.totalorder %s31, %s47
      %p49 = scmp.eq.s32.totalorder %s23, 0
      %p50 = por %p48, %p49
      %s52 = sadd.s32 %s51, 1
      %p55 = scmp.eq.s32.totalorder %s17, 1
      %p56 = scmp.ne.s32.totalorder %s51, %s53
      %p57 = scmp.eq.s32.totalorder %s17, 0
      %p58 = por %p56, %p57
      %p59 = scmp.ne.s32.totalorder %s51, %s53
      %p60 = scmp.eq.s32.totalorder %s22, 1
      %p61 = por %p59, %p60
      %p62 = scmp.ne.s32.totalorder %s53, %s54
      %p63 = scmp.eq.s32.totalorder %s22, 0
      %p64 = por %p62, %p63
      %p65 = scmp.ne.s32.totalorder %s53, %s54
      %p66 = scmp.eq.s32.totalorder %s23, 1
      %p67 = por %p65, %p66
      %p69 = scmp.ne.s32.totalorder %s54, %s68
      %p70 = scmp.eq.s32.totalorder %s23, 0
      %p71 = por %p69, %p70
      %s72 = ssub.s32 %s17, %s24
      %p73 = scmp.eq.s32.totalorder %s72, 0
      %s75 = sadd.s32 %s74, 1
      %s76 = scalar_select %p73, %s74, %s75
      %p79 = pneg %p73
      %p80 = scmp.eq.s32.totalorder %s17, 1
      %p81 = por %p79, %p80
      %p82 = scmp.ne.s32.totalorder %s74, %s77
      %p83 = scmp.eq.s32.totalorder %s17, 0
      %p84 = por %p82, %p83
      %p85 = scmp.ne.s32.totalorder %s74, %s77
      %p86 = scmp.eq.s32.totalorder %s22, 1
      %p87 = por %p85, %p86
      %p88 = scmp.ne.s32.totalorder %s77, %s78
      %p89 = scmp.eq.s32.totalorder %s22, 0
      %p90 = por %p88, %p89
      %p91 = scmp.ne.s32.totalorder %s77, %s78
      %p92 = scmp.eq.s32.totalorder %s23, 1
      %p93 = por %p91, %p92
      %p95 = scmp.ne.s32.totalorder %s78, %s94
      %p96 = scmp.eq.s32.totalorder %s23, 0
      %p97 = por %p95, %p96
      %s98 = ssub.s32 %s17, %s24
      %p99 = scmp.eq.s32.totalorder %s98, 0
      %s101 = sadd.s32 %s100, 1
      %s102 = scalar_select %p99, %s100, %s101
      %p105 = pneg %p99
      %p106 = scmp.eq.s32.totalorder %s17, 1
      %p107 = por %p105, %p106
      %p108 = scmp.ne.s32.totalorder %s100, %s103
      %p109 = scmp.eq.s32.totalorder %s17, 0
      %p110 = por %p108, %p109
      %p111 = scmp.ne.s32.totalorder %s100, %s103
      %p112 = scmp.eq.s32.totalorder %s22, 1
      %p113 = por %p111, %p112
      %p114 = scmp.ne.s32.totalorder %s103, %s104
      %p115 = scmp.eq.s32.totalorder %s22, 0
      %p116 = por %p114, %p115
      %p117 = scmp.ne.s32.totalorder %s103, %s104
      %p118 = scmp.eq.s32.totalorder %s23, 1
      %p119 = por %p117, %p118
      %p121 = scmp.ne.s32.totalorder %s104, %s120
      %p122 = scmp.eq.s32.totalorder %s23, 0
      %p123 = por %p121, %p122
      %s124 = ssub.s32 %s17, %s24
      %p125 = scmp.eq.s32.totalorder %s124, 0
      %s127 = sadd.s32 %s126, 1
      %s128 = scalar_select %p125, %s126, %s127
      %p131 = pneg %p125
      %p132 = scmp.eq.s32.totalorder %s17, 1
      %p133 = por %p131, %p132
      %p134 = scmp.ne.s32.totalorder %s126, %s129
      %p135 = scmp.eq.s32.totalorder %s17, 0
      %p136 = por %p134, %p135
      %p137 = scmp.ne.s32.totalorder %s126, %s129
      %p138 = scmp.eq.s32.totalorder %s22, 1
      %p139 = por %p137, %p138
      %p140 = scmp.ne.s32.totalorder %s129, %s130
      %p141 = scmp.eq.s32.totalorder %s22, 0
      %p142 = por %p140, %p141
      %p143 = scmp.ne.s32.totalorder %s129, %s130
      %p144 = scmp.eq.s32.totalorder %s23, 1
      %p145 = por %p143, %p144
      %p147 = scmp.ne.s32.totalorder %s130, %s146
      %p148 = scmp.eq.s32.totalorder %s23, 0
      %p149 = por %p147, %p148
      %p150 = scmp.le.s32.totalorder 1, %s17
      %p151 = scmp.lt.s32.totalorder %s17, 3
      %p152 = pnand %p150, %p151
      %p153 = pneg %p152
      // Predicated region
      $region9: #{tpu_custom_call.1} parent=5 // pred_check
        _
      $region10: #{tpu_custom_call.1} parent=5 // pred_check_branch
        %155 = sbr.rel (%p152) target = $region12
      $region11: #{tpu_custom_call.1} parent=5 // pred_region
        %s156 = ssub.s32 %s17, 1
        // Predicated region
        $region13: #{tpu_custom_call.1} parent=11 // pred_check
          %p157 = pneg %p64
        $region14: #{tpu_custom_call.1} parent=11 // pred_check_branch
          %159 = sbr.rel (%p157) target = $region16
        $region15: #{tpu_custom_call.1} parent=11 // pred_region
          %161 = vsyncadd [#allocation6], 0
          %s162 = sshll.u32 %s1, 4
          %s163 = int_to_ptr.hbm [resolvable:$true] %s162
          %s164 = sshll.u32 [#allocation5], 4
          %s165 = int_to_ptr.vmem [resolvable:$true] %s164
          %170 = dma.hbm_to_vmem [thread:$0]  %s163, 1024, %s165, [#allocation6], 128, 128, 8
        $region16: #{tpu_custom_call.1} parent=11 // pred_fallthru
          _
      $region12: #{tpu_custom_call.1} parent=5 // pred_fallthru
        _
      %p171 = scmp.lt.s32.totalorder %s17, 2
      // Predicated region
      $region17: #{tpu_custom_call.1} parent=5 // pred_check
        %p172 = pneg %p171
      $region18: #{tpu_custom_call.1} parent=5 // pred_check_branch
        %174 = sbr.rel (%p172) target = $region20
      $region19: #{tpu_custom_call.1} parent=5 // pred_region
        // Predicated region
        $region21: #{tpu_custom_call.1} parent=19 // pred_check
          %p175 = pneg %p37
        $region22: #{tpu_custom_call.1} parent=19 // pred_check_branch
          %177 = sbr.rel (%p175) target = $region24
        $region23: #{tpu_custom_call.1} parent=19 // pred_region
          %s178 = sand.u32 %s17, 1
          %s179 = scalar_lea.sflag [#allocation3], %s178
          %s180 = sand.u32 %s27, 1
          %s181 = smul.addr %s180, 256
          %s182 = scalar_lea.vmem [#allocation2], %s181
          %s183 = smul.u32 2, %s17
          %185 = vsyncadd %s179, 0
          %s186 = smul.addr %s183, 4
          %s187 = scalar_lea.hbm %s0, %s186
          %s188 = sshll.u32 %s187, 4
          %s189 = int_to_ptr.hbm [resolvable:$true] %s188
          %s190 = sshll.u32 %s182, 4
          %s191 = int_to_ptr.vmem [resolvable:$true] %s190
          %196 = dma.hbm_to_vmem [thread:$0]  %s189, 4096, %s191, %s179, 256, 128, 8
        $region24: #{tpu_custom_call.1} parent=19 // pred_fallthru
          _
        // Predicated region
        $region25: #{tpu_custom_call.1} parent=19 // pred_check
          %p197 = pneg %p84
        $region26: #{tpu_custom_call.1} parent=19 // pred_check_branch
          %199 = sbr.rel (%p197) target = $region28
        $region27: #{tpu_custom_call.1} parent=19 // pred_region
          %s200 = sand.u32 %s17, 1
          %s201 = scalar_lea.sflag [#allocation3], %s200
          %s202 = sand.u32 %s74, 1
          %s203 = smul.addr %s202, 128
          %s204 = scalar_lea.vmem [#allocation7], %s203
          %s205 = smul.u32 2, %s17
          %207 = vsyncadd %s201, 0
          %s208 = smul.addr %s205, 4
          %s209 = scalar_lea.hbm %s2, %s208
          %s210 = sshll.u32 %s209, 4
          %s211 = int_to_ptr.hbm [resolvable:$true] %s210
          %s212 = sshll.u32 %s204, 4
          %s213 = int_to_ptr.vmem [resolvable:$true] %s212
          %218 = dma.hbm_to_vmem [thread:$0]  %s211, 2048, %s213, %s201, 256, 128, 8
        $region28: #{tpu_custom_call.1} parent=19 // pred_fallthru
          _
        // Predicated region
        $region29: #{tpu_custom_call.1} parent=19 // pred_check
          %p219 = pneg %p110
        $region30: #{tpu_custom_call.1} parent=19 // pred_check_branch
          %221 = sbr.rel (%p219) target = $region32
        $region31: #{tpu_custom_call.1} parent=19 // pred_region
          %s222 = sand.u32 %s17, 1
          %s223 = scalar_lea.sflag [#allocation3], %s222
          %s224 = sand.u32 %s100, 1
          %s225 = smul.addr %s224, 2
          %s226 = scalar_lea.vmem [#allocation8], %s225
          %s227 = smul.u32 2, %s17
          %229 = vsyncadd %s223, 0
          %s230 = scalar_lea.hbm %s3, %s227
          %s232 = sshll.u32 %s230, 4
          %s233 = int_to_ptr.hbm [resolvable:$true] %s232
          %s234 = sshll.u32 %s226, 4
          %s235 = int_to_ptr.vmem [resolvable:$true] %s234
          %237 = dma.hbm_to_vmem [thread:$0]  %s233, 32, %s235, %s223
        $region32: #{tpu_custom_call.1} parent=19 // pred_fallthru
          _
      $region20: #{tpu_custom_call.1} parent=5 // pred_fallthru
        _
      %p238 = scmp.le.s32.totalorder 1, %s17
      %p239 = scmp.lt.s32.totalorder %s17, 3
      %p240 = pnand %p238, %p239
      %p241 = pneg %p240
      // Predicated region
      $region33: #{tpu_custom_call.1} parent=5 // pred_check
        _
      $region34: #{tpu_custom_call.1} parent=5 // pred_check_branch
        %243 = sbr.rel (%p240) target = $region36
      $region35: #{tpu_custom_call.1} parent=5 // pred_region
        %s244 = ssub.s32 %s17, 1
        %s245 = sand.u32 %s22, 1
        %s246 = scalar_lea.sflag [#allocation3], %s245
        %s247 = sand.u32 %s30, 1
        %s248 = smul.addr %s247, 256
        %s249 = scalar_lea.vmem [#allocation2], %s248
        // Predicated region
        $region37: #{tpu_custom_call.1} parent=35 // pred_check
          %p250 = pneg %p43
        $region38: #{tpu_custom_call.1} parent=35 // pred_check_branch
          %252 = sbr.rel (%p250) target = $region40
        $region39: #{tpu_custom_call.1} parent=35 // pred_region
          %254 = dma.done %s246, 4096
        $region40: #{tpu_custom_call.1} parent=35 // pred_fallthru
          _
        // Predicated region
        $region41: #{tpu_custom_call.1} parent=35 // pred_check
          %p255 = pneg %p64
        $region42: #{tpu_custom_call.1} parent=35 // pred_check_branch
          %257 = sbr.rel (%p255) target = $region44
        $region43: #{tpu_custom_call.1} parent=35 // pred_region
          %259 = dma.done [#allocation6], 1024
        $region44: #{tpu_custom_call.1} parent=35 // pred_fallthru
          _
        %s260 = sand.u32 %s22, 1
        %s261 = scalar_lea.sflag [#allocation3], %s260
        %s262 = sand.u32 %s77, 1
        %s263 = smul.addr %s262, 128
        %s264 = scalar_lea.vmem [#allocation7], %s263
        // Predicated region
        $region45: #{tpu_custom_call.1} parent=35 // pred_check
          %p265 = pneg %p90
        $region46: #{tpu_custom_call.1} parent=35 // pred_check_branch
          %267 = sbr.rel (%p265) target = $region48
        $region47: #{tpu_custom_call.1} parent=35 // pred_region
          %269 = dma.done %s261, 2048
        $region48: #{tpu_custom_call.1} parent=35 // pred_fallthru
          _
        %s270 = sand.u32 %s22, 1
        %s271 = scalar_lea.sflag [#allocation3], %s270
        %s272 = sand.u32 %s103, 1
        %s273 = smul.addr %s272, 2
        %s274 = scalar_lea.vmem [#allocation8], %s273
        // Predicated region
        $region49: #{tpu_custom_call.1} parent=35 // pred_check
          %p275 = pneg %p116
        $region50: #{tpu_custom_call.1} parent=35 // pred_check_branch
          %277 = sbr.rel (%p275) target = $region52
        $region51: #{tpu_custom_call.1} parent=35 // pred_region
          %279 = dma.done %s271, 32
        $region52: #{tpu_custom_call.1} parent=35 // pred_fallthru
          _
        %s280 = sand.u32 %s22, 1
        %s281 = scalar_lea.sflag [#allocation3], %s280
        %s282 = sand.u32 %s30, 1
        %s283 = smul.addr %s282, 256
        %s284 = scalar_lea.vmem [#allocation2], %s283
        %p285 = pneg %p43
        %p286 = pneg %p40
        %p287 = pneg %p64
        %p288 = pneg %p61
        %s289 = sand.u32 %s22, 1
        %s290 = scalar_lea.sflag [#allocation3], %s289
        %s291 = sand.u32 %s77, 1
        %s292 = smul.addr %s291, 128
        %s293 = scalar_lea.vmem [#allocation7], %s292
        %p294 = pneg %p90
        %p295 = pneg %p87
        %s296 = sand.u32 %s22, 1
        %s297 = scalar_lea.sflag [#allocation3], %s296
        %s298 = sand.u32 %s103, 1
        %s299 = smul.addr %s298, 2
        %s300 = scalar_lea.vmem [#allocation8], %s299
        %p301 = pneg %p116
        %p302 = pneg %p113
        %p303 = pneg %p142
        %p304 = pneg %p139
        %s305 = sand.u32 %s129, 1
        %s306 = scalar_lea.sflag [#allocation4], %s305
        %s307 = sand.u32 %s129, 1
        %s308 = smul.addr %s307, 2
        %s309 = scalar_lea.vmem [#allocation9], %s308
        %s310 = smul.u32 2, %s22
        %s311 = smul.u32 2, %s22
        %s312 = smul.u32 2, %s22
        %s313 = smul.u32 2, %s22
        %v314 = vld [vmem:[#allocation5] sm:$0xff]
        %v315 = vld [vmem:[#allocation5 + $0x8] sm:$0xff]
        %v316 = vld [vmem:[#allocation5 + $0x10] sm:$0xff]
        %v317 = vld [vmem:[#allocation5 + $0x18] sm:$0xff]
        %v318 = vld [vmem:[#allocation5 + $0x20] sm:$0xff]
        %v319 = vld [vmem:[#allocation5 + $0x28] sm:$0xff]
        %v320 = vld [vmem:[#allocation5 + $0x30] sm:$0xff]
        %v321 = vld [vmem:[#allocation5 + $0x38] sm:$0xff]
        %v322 = vld [vmem:[%s249] sm:$0xff]
        %v323 = vld [vmem:[%s249 + $0x8] sm:$0xff]
        %v324 = vld [vmem:[%s249 + $0x10] sm:$0xff]
        %v325 = vld [vmem:[%s249 + $0x18] sm:$0xff]
        %v326 = vld [vmem:[%s249 + $0x20] sm:$0xff]
        %v327 = vld [vmem:[%s249 + $0x28] sm:$0xff]
        %v328 = vld [vmem:[%s249 + $0x30] sm:$0xff]
        %v329 = vld [vmem:[%s249 + $0x38] sm:$0xff]
        %v330 = vld [vmem:[%s249 + $0x40] sm:$0xff]
        %v331 = vld [vmem:[%s249 + $0x48] sm:$0xff]
        %v332 = vld [vmem:[%s249 + $0x50] sm:$0xff]
        %v333 = vld [vmem:[%s249 + $0x58] sm:$0xff]
        %v334 = vld [vmem:[%s249 + $0x60] sm:$0xff]
        %v335 = vld [vmem:[%s249 + $0x68] sm:$0xff]
        %v336 = vld [vmem:[%s249 + $0x70] sm:$0xff]
        %v337 = vld [vmem:[%s249 + $0x78] sm:$0xff]
        %v338 = vld [vmem:[%s249 + $0x80] sm:$0xff]
        %v339 = vld [vmem:[%s249 + $0x88] sm:$0xff]
        %v340 = vld [vmem:[%s249 + $0x90] sm:$0xff]
        %v341 = vld [vmem:[%s249 + $0x98] sm:$0xff]
        %v342 = vld [vmem:[%s249 + $0xa0] sm:$0xff]
        %v343 = vld [vmem:[%s249 + $0xa8] sm:$0xff]
        %v344 = vld [vmem:[%s249 + $0xb0] sm:$0xff]
        %v345 = vld [vmem:[%s249 + $0xb8] sm:$0xff]
        %v346 = vld [vmem:[%s249 + $0xc0] sm:$0xff]
        %v347 = vld [vmem:[%s249 + $0xc8] sm:$0xff]
        %v348 = vld [vmem:[%s249 + $0xd0] sm:$0xff]
        %v349 = vld [vmem:[%s249 + $0xd8] sm:$0xff]
        %v350 = vld [vmem:[%s249 + $0xe0] sm:$0xff]
        %v351 = vld [vmem:[%s249 + $0xe8] sm:$0xff]
        %v352 = vld [vmem:[%s249 + $0xf0] sm:$0xff]
        %v353 = vld [vmem:[%s249 + $0xf8] sm:$0xff]
        %v362 = vunpack.c.l.b16 %v314
        %v363 = vunpack.c.h.b16 %v314
        %v364 = vunpack.c.l.b16 %v315
        %v365 = vunpack.c.h.b16 %v315
        %v366 = vunpack.c.l.b16 %v316
        %v367 = vunpack.c.h.b16 %v316
        %v368 = vunpack.c.l.b16 %v317
        %v369 = vunpack.c.h.b16 %v317
        %v370 = vunpack.c.l.b16 %v318
        %v371 = vunpack.c.h.b16 %v318
        %v372 = vunpack.c.l.b16 %v319
        %v373 = vunpack.c.h.b16 %v319
        %v374 = vunpack.c.l.b16 %v320
        %v375 = vunpack.c.h.b16 %v320
        %v376 = vunpack.c.l.b16 %v321
        %v377 = vunpack.c.h.b16 %v321
        %v378 = vpack.c.b16 %v364, %v362
        %v379 = vpack.c.b16 %v365, %v363
        %v380 = vpack.c.b16 %v368, %v366
        %v381 = vpack.c.b16 %v369, %v367
        %v382 = vpack.c.b16 %v372, %v370
        %v383 = vpack.c.b16 %v373, %v371
        %v384 = vpack.c.b16 %v376, %v374
        %v385 = vpack.c.b16 %v377, %v375
        %v426 = vunpack.c.l.b16 %v322
        %v427 = vunpack.c.h.b16 %v322
        %v428 = vunpack.c.l.b16 %v323
        %v429 = vunpack.c.h.b16 %v323
        %v430 = vunpack.c.l.b16 %v324
        %v431 = vunpack.c.h.b16 %v324
        %v432 = vunpack.c.l.b16 %v325
        %v433 = vunpack.c.h.b16 %v325
        %v434 = vunpack.c.l.b16 %v326
        %v435 = vunpack.c.h.b16 %v326
        %v436 = vunpack.c.l.b16 %v327
        %v437 = vunpack.c.h.b16 %v327
        %v438 = vunpack.c.l.b16 %v328
        %v439 = vunpack.c.h.b16 %v328
        %v440 = vunpack.c.l.b16 %v329
        %v441 = vunpack.c.h.b16 %v329
        %v442 = vunpack.c.l.b16 %v330
        %v443 = vunpack.c.h.b16 %v330
        %v444 = vunpack.c.l.b16 %v331
        %v445 = vunpack.c.h.b16 %v331
        %v446 = vunpack.c.l.b16 %v332
        %v447 = vunpack.c.h.b16 %v332
        %v448 = vunpack.c.l.b16 %v333
        %v449 = vunpack.c.h.b16 %v333
        %v450 = vunpack.c.l.b16 %v334
        %v451 = vunpack.c.h.b16 %v334
        %v452 = vunpack.c.l.b16 %v335
        %v453 = vunpack.c.h.b16 %v335
        %v454 = vunpack.c.l.b16 %v336
        %v455 = vunpack.c.h.b16 %v336
        %v456 = vunpack.c.l.b16 %v337
        %v457 = vunpack.c.h.b16 %v337
        %v458 = vunpack.c.l.b16 %v338
        %v459 = vunpack.c.h.b16 %v338
        %v460 = vunpack.c.l.b16 %v339
        %v461 = vunpack.c.h.b16 %v339
        %v462 = vunpack.c.l.b16 %v340
        %v463 = vunpack.c.h.b16 %v340
        %v464 = vunpack.c.l.b16 %v341
        %v465 = vunpack.c.h.b16 %v341
        %v466 = vunpack.c.l.b16 %v342
        %v467 = vunpack.c.h.b16 %v342
        %v468 = vunpack.c.l.b16 %v343
        %v469 = vunpack.c.h.b16 %v343
        %v470 = vunpack.c.l.b16 %v344
        %v471 = vunpack.c.h.b16 %v344
        %v472 = vunpack.c.l.b16 %v345
        %v473 = vunpack.c.h.b16 %v345
        %v474 = vunpack.c.l.b16 %v346
        %v475 = vunpack.c.h.b16 %v346
        %v476 = vunpack.c.l.b16 %v347
        %v477 = vunpack.c.h.b16 %v347
        %v478 = vunpack.c.l.b16 %v348
        %v479 = vunpack.c.h.b16 %v348
        %v480 = vunpack.c.l.b16 %v349
        %v481 = vunpack.c.h.b16 %v349
        %v482 = vunpack.c.l.b16 %v350
        %v483 = vunpack.c.h.b16 %v350
        %v484 = vunpack.c.l.b16 %v351
        %v485 = vunpack.c.h.b16 %v351
        %v486 = vunpack.c.l.b16 %v352
        %v487 = vunpack.c.h.b16 %v352
        %v488 = vunpack.c.l.b16 %v353
        %v489 = vunpack.c.h.b16 %v353
        %v490 = vpack.c.b16 %v428, %v426
        %v491 = vpack.c.b16 %v429, %v427
        %v492 = vpack.c.b16 %v432, %v430
        %v493 = vpack.c.b16 %v433, %v431
        %v494 = vpack.c.b16 %v436, %v434
        %v495 = vpack.c.b16 %v437, %v435
        %v496 = vpack.c.b16 %v440, %v438
        %v497 = vpack.c.b16 %v441, %v439
        %v498 = vpack.c.b16 %v444, %v442
        %v499 = vpack.c.b16 %v445, %v443
        %v500 = vpack.c.b16 %v448, %v446
        %v501 = vpack.c.b16 %v449, %v447
        %v502 = vpack.c.b16 %v452, %v450
        %v503 = vpack.c.b16 %v453, %v451
        %v504 = vpack.c.b16 %v456, %v454
        %v505 = vpack.c.b16 %v457, %v455
        %v506 = vpack.c.b16 %v460, %v458
        %v507 = vpack.c.b16 %v461, %v459
        %v508 = vpack.c.b16 %v464, %v462
        %v509 = vpack.c.b16 %v465, %v463
        %v510 = vpack.c.b16 %v468, %v466
        %v511 = vpack.c.b16 %v469, %v467
        %v512 = vpack.c.b16 %v472, %v470
        %v513 = vpack.c.b16 %v473, %v471
        %v514 = vpack.c.b16 %v476, %v474
        %v515 = vpack.c.b16 %v477, %v475
        %v516 = vpack.c.b16 %v480, %v478
        %v517 = vpack.c.b16 %v481, %v479
        %v518 = vpack.c.b16 %v484, %v482
        %v519 = vpack.c.b16 %v485, %v483
        %v520 = vpack.c.b16 %v488, %v486
        %v521 = vpack.c.b16 %v489, %v487
        %554 = vmatpush.bf16.msra.mxu0 %v504
        %555 = vmatpush.bf16.msra.mxu0 %v502
        %556 = vmatpush.bf16.msra.mxu0 %v500
        %557 = vmatpush.bf16.msra.mxu0 %v498
        %558 = vmatpush.bf16.msra.mxu0 %v496
        %559 = vmatpush.bf16.msra.mxu0 %v494
        %560 = vmatpush.bf16.msra.mxu0 %v492
        %561 = vmatpush.bf16.msra.mxu0 %v490
        %562 = vmatmul.bf16.gmra.mxu0 %v378
        %v563 = vpop.f32.mrf.mxu0
        %v564 = vadd.f32 0.0, %v563
        %v565 = vpop.f32.mrf.mxu0
        %v566 = vadd.f32 0.0, %v565
        %567 = vmatmul.bf16.gmra.mxu0 %v380
        %v568 = vpop.f32.mrf.mxu0
        %v569 = vadd.f32 0.0, %v568
        %v570 = vpop.f32.mrf.mxu0
        %v571 = vadd.f32 0.0, %v570
        %572 = vmatmul.bf16.gmra.mxu0 %v382
        %v573 = vpop.f32.mrf.mxu0
        %v574 = vadd.f32 0.0, %v573
        %v575 = vpop.f32.mrf.mxu0
        %v576 = vadd.f32 0.0, %v575
        %577 = vmatmul.bf16.gmra.mxu0 %v384
        %v578 = vpop.f32.mrf.mxu0
        %v579 = vadd.f32 0.0, %v578
        %v580 = vpop.f32.mrf.mxu0
        %v581 = vadd.f32 0.0, %v580
        %582 = vdwg.mxu0
        %583 = vmatpush.bf16.msra.mxu0 %v520
        %584 = vmatpush.bf16.msra.mxu0 %v518
        %585 = vmatpush.bf16.msra.mxu0 %v516
        %586 = vmatpush.bf16.msra.mxu0 %v514
        %587 = vmatpush.bf16.msra.mxu0 %v512
        %588 = vmatpush.bf16.msra.mxu0 %v510
        %589 = vmatpush.bf16.msra.mxu0 %v508
        %590 = vmatpush.bf16.msra.mxu0 %v506
        %591 = vmatmul.bf16.gmra.mxu0 %v379
        %v592 = vpop.f32.mrf.mxu0
        %v593 = vadd.f32 %v564, %v592
        %v594 = vpop.f32.mrf.mxu0
        %v595 = vadd.f32 %v566, %v594
        %596 = vmatmul.bf16.gmra.mxu0 %v381
        %v597 = vpop.f32.mrf.mxu0
        %v598 = vadd.f32 %v569, %v597
        %v599 = vpop.f32.mrf.mxu0
        %v600 = vadd.f32 %v571, %v599
        %601 = vmatmul.bf16.gmra.mxu0 %v383
        %v602 = vpop.f32.mrf.mxu0
        %v603 = vadd.f32 %v574, %v602
        %v604 = vpop.f32.mrf.mxu0
        %v605 = vadd.f32 %v576, %v604
        %606 = vmatmul.bf16.gmra.mxu0 %v385
        %v607 = vpop.f32.mrf.mxu0
        %v608 = vadd.f32 %v579, %v607
        %v609 = vpop.f32.mrf.mxu0
        %v610 = vadd.f32 %v581, %v609
        %611 = vdwg.mxu0
        %612 = vmatpush.bf16.msra.mxu0 %v505
        %613 = vmatpush.bf16.msra.mxu0 %v503
        %614 = vmatpush.bf16.msra.mxu0 %v501
        %615 = vmatpush.bf16.msra.mxu0 %v499
        %616 = vmatpush.bf16.msra.mxu0 %v497
        %617 = vmatpush.bf16.msra.mxu0 %v495
        %618 = vmatpush.bf16.msra.mxu0 %v493
        %619 = vmatpush.bf16.msra.mxu0 %v491
        %620 = vmatmul.bf16.gmra.mxu0 %v378
        %v621 = vpop.f32.mrf.mxu0
        %v622 = vadd.f32 0.0, %v621
        %v623 = vpop.f32.mrf.mxu0
        %v624 = vadd.f32 0.0, %v623
        %625 = vmatmul.bf16.gmra.mxu0 %v380
        %v626 = vpop.f32.mrf.mxu0
        %v627 = vadd.f32 0.0, %v626
        %v628 = vpop.f32.mrf.mxu0
        %v629 = vadd.f32 0.0, %v628
        %630 = vmatmul.bf16.gmra.mxu0 %v382
        %v631 = vpop.f32.mrf.mxu0
        %v632 = vadd.f32 0.0, %v631
        %v633 = vpop.f32.mrf.mxu0
        %v634 = vadd.f32 0.0, %v633
        %635 = vmatmul.bf16.gmra.mxu0 %v384
        %v636 = vpop.f32.mrf.mxu0
        %v637 = vadd.f32 0.0, %v636
        %v638 = vpop.f32.mrf.mxu0
        %v639 = vadd.f32 0.0, %v638
        %640 = vdwg.mxu0
        %641 = vmatpush.bf16.msra.mxu0 %v521
        %642 = vmatpush.bf16.msra.mxu0 %v519
        %643 = vmatpush.bf16.msra.mxu0 %v517
        %644 = vmatpush.bf16.msra.mxu0 %v515
        %645 = vmatpush.bf16.msra.mxu0 %v513
        %646 = vmatpush.bf16.msra.mxu0 %v511
        %647 = vmatpush.bf16.msra.mxu0 %v509
        %648 = vmatpush.bf16.msra.mxu0 %v507
        %649 = vmatmul.bf16.gmra.mxu0 %v379
        %v650 = vpop.f32.mrf.mxu0
        %v651 = vadd.f32 %v622, %v650
        %v652 = vpop.f32.mrf.mxu0
        %v653 = vadd.f32 %v624, %v652
        %654 = vmatmul.bf16.gmra.mxu0 %v381
        %v655 = vpop.f32.mrf.mxu0
        %v656 = vadd.f32 %v627, %v655
        %v657 = vpop.f32.mrf.mxu0
        %v658 = vadd.f32 %v629, %v657
        %659 = vmatmul.bf16.gmra.mxu0 %v383
        %v660 = vpop.f32.mrf.mxu0
        %v661 = vadd.f32 %v632, %v660
        %v662 = vpop.f32.mrf.mxu0
        %v663 = vadd.f32 %v634, %v662
        %664 = vmatmul.bf16.gmra.mxu0 %v385
        %v665 = vpop.f32.mrf.mxu0
        %v666 = vadd.f32 %v637, %v665
        %v667 = vpop.f32.mrf.mxu0
        %v668 = vadd.f32 %v639, %v667
        %669 = vdwg.mxu0
        %v670 = vld [vmem:[%s264] sm:$0xff]
        %v671 = vld [vmem:[%s264 + $0x8] sm:$0xff]
        %v672 = vld [vmem:[%s264 + $0x10] sm:$0xff]
        %v673 = vld [vmem:[%s264 + $0x18] sm:$0xff]
        %v674 = vld [vmem:[%s264 + $0x20] sm:$0xff]
        %v675 = vld [vmem:[%s264 + $0x28] sm:$0xff]
        %v676 = vld [vmem:[%s264 + $0x30] sm:$0xff]
        %v677 = vld [vmem:[%s264 + $0x38] sm:$0xff]
        %v678 = vunpack.c.l.bf16 %v670
        %v679 = vunpack.c.h.bf16 %v670
        %v680 = vunpack.c.l.bf16 %v671
        %v681 = vunpack.c.h.bf16 %v671
        %v682 = vunpack.c.l.bf16 %v672
        %v683 = vunpack.c.h.bf16 %v672
        %v684 = vunpack.c.l.bf16 %v673
        %v685 = vunpack.c.h.bf16 %v673
        %v686 = vunpack.c.l.bf16 %v674
        %v687 = vunpack.c.h.bf16 %v674
        %v688 = vunpack.c.l.bf16 %v675
        %v689 = vunpack.c.h.bf16 %v675
        %v690 = vunpack.c.l.bf16 %v676
        %v691 = vunpack.c.h.bf16 %v676
        %v692 = vunpack.c.l.bf16 %v677
        %v693 = vunpack.c.h.bf16 %v677
        %v694 = vld [vmem:[%s264 + $0x40] sm:$0xff]
        %v695 = vld [vmem:[%s264 + $0x48] sm:$0xff]
        %v696 = vld [vmem:[%s264 + $0x50] sm:$0xff]
        %v697 = vld [vmem:[%s264 + $0x58] sm:$0xff]
        %v698 = vld [vmem:[%s264 + $0x60] sm:$0xff]
        %v699 = vld [vmem:[%s264 + $0x68] sm:$0xff]
        %v700 = vld [vmem:[%s264 + $0x70] sm:$0xff]
        %v701 = vld [vmem:[%s264 + $0x78] sm:$0xff]
        %v702 = vunpack.c.l.bf16 %v694
        %v703 = vunpack.c.h.bf16 %v694
        %v704 = vunpack.c.l.bf16 %v695
        %v705 = vunpack.c.h.bf16 %v695
        %v706 = vunpack.c.l.bf16 %v696
        %v707 = vunpack.c.h.bf16 %v696
        %v708 = vunpack.c.l.bf16 %v697
        %v709 = vunpack.c.h.bf16 %v697
        %v710 = vunpack.c.l.bf16 %v698
        %v711 = vunpack.c.h.bf16 %v698
        %v712 = vunpack.c.l.bf16 %v699
        %v713 = vunpack.c.h.bf16 %v699
        %v714 = vunpack.c.l.bf16 %v700
        %v715 = vunpack.c.h.bf16 %v700
        %v716 = vunpack.c.l.bf16 %v701
        %v717 = vunpack.c.h.bf16 %v701
        %v718 = vadd.f32 %v678, %v593
        %v719 = vadd.f32 %v679, %v651
        %v720 = vadd.f32 %v680, %v595
        %v721 = vadd.f32 %v681, %v653
        %v722 = vadd.f32 %v682, %v598
        %v723 = vadd.f32 %v683, %v656
        %v724 = vadd.f32 %v684, %v600
        %v725 = vadd.f32 %v685, %v658
        %v726 = vadd.f32 %v686, %v603
        %v727 = vadd.f32 %v687, %v661
        %v728 = vadd.f32 %v688, %v605
        %v729 = vadd.f32 %v689, %v663
        %v730 = vadd.f32 %v690, %v608
        %v731 = vadd.f32 %v691, %v666
        %v732 = vadd.f32 %v692, %v610
        %v733 = vadd.f32 %v693, %v668
        %v734 = vmul.f32 %v718, %v702
        %v735 = vmul.f32 %v719, %v703
        %v736 = vmul.f32 %v720, %v704
        %v737 = vmul.f32 %v721, %v705
        %v738 = vmul.f32 %v722, %v706
        %v739 = vmul.f32 %v723, %v707
        %v740 = vmul.f32 %v724, %v708
        %v741 = vmul.f32 %v725, %v709
        %v742 = vmul.f32 %v726, %v710
        %v743 = vmul.f32 %v727, %v711
        %v744 = vmul.f32 %v728, %v712
        %v745 = vmul.f32 %v729, %v713
        %v746 = vmul.f32 %v730, %v714
        %v747 = vmul.f32 %v731, %v715
        %v748 = vmul.f32 %v732, %v716
        %v749 = vmul.f32 %v733, %v717
        %v750 = vadd.f32 %v734, %v736
        %v751 = vadd.f32 %v750, %v738
        %v752 = vadd.f32 %v751, %v740
        %v753 = vadd.f32 %v752, %v742
        %v754 = vadd.f32 %v753, %v744
        %v755 = vadd.f32 %v754, %v746
        %v756 = vadd.f32 %v755, %v748
        %v757 = vrot.slane %v756, 4
        %v758 = vadd.f32 %v756, %v757
        %v759 = vrot.slane %v758, 2
        %v760 = vadd.f32 %v758, %v759
        %v761 = vrot.slane %v760, 1
        %v762 = vadd.f32 %v760, %v761
        %v763 = vadd.f32 %v735, %v737
        %v764 = vadd.f32 %v763, %v739
        %v765 = vadd.f32 %v764, %v741
        %v766 = vadd.f32 %v765, %v743
        %v767 = vadd.f32 %v766, %v745
        %v768 = vadd.f32 %v767, %v747
        %v769 = vadd.f32 %v768, %v749
        %v770 = vrot.slane %v769, 4
        %v771 = vadd.f32 %v769, %v770
        %v772 = vrot.slane %v771, 2
        %v773 = vadd.f32 %v771, %v772
        %v774 = vrot.slane %v773, 1
        %v775 = vadd.f32 %v773, %v774
        %v776 = vld [vmem:[%s274] sm:$0x3]
        %v778 = vperm.slane %v776, 0
        %v779 = vperm.slane %v776, 1
        %v782 = vadd.f32 %v762, %v778
        %v783 = vadd.f32 %v775, %v779
        %v786 = vrot.slane %v783, 7
        %vm787 = vcmask 1040384
        %v788 = vsel %vm787, %v782, %v786
        %v790 = vlaneseq
        %vm791 = vcmp.ge.s32.totalorder %v790, 0
        %vm792 = vcmp.lt.s32.totalorder %v790, 256
        %vm793 = vmand %vm791, %vm792
        %794 = vst.msk [vmem:[%s309] sm:$0x3] %vm793, %v788
        %s795 = sand.u32 %s129, 1
        %s796 = scalar_lea.sflag [#allocation4], %s795
        %s797 = sand.u32 %s129, 1
        %s798 = smul.addr %s797, 2
        %s799 = scalar_lea.vmem [#allocation9], %s798
        // Predicated region
        $region53: #{tpu_custom_call.1} parent=35 // pred_check
          %p800 = pneg %p139
        $region54: #{tpu_custom_call.1} parent=35 // pred_check_branch
          %802 = sbr.rel (%p800) target = $region56
        $region55: #{tpu_custom_call.1} parent=35 // pred_region
          %s803 = smul.u32 2, %s22
          %805 = vsyncadd %s796, 0
          %s806 = scalar_lea.hbm %s4, %s803
          %s808 = sshll.u32 %s799, 4
          %s809 = int_to_ptr.vmem [resolvable:$true] %s808
          %s810 = sshll.u32 %s806, 4
          %s811 = int_to_ptr.hbm [resolvable:$true] %s810
          %813 = dma.vmem_to_hbm [thread:$0]  %s809, 32, %s811, %s796
        $region56: #{tpu_custom_call.1} parent=35 // pred_fallthru
          _
      $region36: #{tpu_custom_call.1} parent=5 // pred_fallthru
        _
      %p814 = scmp.le.s32.totalorder 2, %s17
      // Predicated region
      $region57: #{tpu_custom_call.1} parent=5 // pred_check
        %p815 = pneg %p814
      $region58: #{tpu_custom_call.1} parent=5 // pred_check_branch
        %817 = sbr.rel (%p815) target = $region60
      $region59: #{tpu_custom_call.1} parent=5 // pred_region
        %s818 = ssub.s32 %s17, 2
        // Predicated region
        $region61: #{tpu_custom_call.1} parent=59 // pred_check
          %p819 = pneg %p145
        $region62: #{tpu_custom_call.1} parent=59 // pred_check_branch
          %821 = sbr.rel (%p819) target = $region64
        $region63: #{tpu_custom_call.1} parent=59 // pred_region
          %s822 = sand.u32 %s130, 1
          %s823 = scalar_lea.sflag [#allocation4], %s822
          %s824 = sand.u32 %s130, 1
          %s825 = smul.addr %s824, 2
          %s826 = scalar_lea.vmem [#allocation9], %s825
          %828 = dma.done %s823, 32
        $region64: #{tpu_custom_call.1} parent=59 // pred_fallthru
          _
      $region60: #{tpu_custom_call.1} parent=5 // pred_fallthru
        _
    $region6: #{tpu_custom_call.1} parent=1 // loop_footer
      %s21 = sadd.s32 1, %s17
    $region7: #{tpu_custom_call.1} parent=1 // loop_footer_branch
      %16 = sbr.rel target = $region3
    $region8: #{tpu_custom_call.1} parent=1 // loop_exit
      _
    %829 = vsyncpa [#allocation3], 1
    %s830 = scalar_lea.sflag [#allocation3], 1
    %831 = vsyncpa %s830, 1
    %832 = vsyncpa [#allocation6], 1
    %833 = vsyncpa [#allocation4], 1
    %s834 = scalar_lea.sflag [#allocation4], 1
    %835 = vsyncpa %s834, 1

</llo_original>
